<compile_context>
chip_gen: v5e
topology: v5e:2x2
jax: 0.10.0
libtpu: 0.0.40
codegen_flags: <defaults>
</compile_context>

<pallas_src>
import functools

import jax
import jax.numpy as jnp
from jax.experimental import pallas as pl
from jax.experimental.pallas import tpu as pltpu

LANES = 128
SUBLANES = 8
TARGET_TILE_BYTES = 8 * 1024 * 1024    # per input buffer (Pallas double-buffers)
MAX_F32_WORK_BYTES = 8 * 1024 * 1024   # bound on the per-tile f32 working copy
VMEM_LIMIT_BYTES = 32 * 1024 * 1024    # fits every generation's VMEM comfortably


def _num_tensorcores() -> int:
    """Return 2 only for chips with two TensorCores per device (v7x)."""
    try:
        kind = jax.devices()[0].device_kind.lower()
    except Exception:
        return 1
    return 2 if "v7" in kind else 1


def _neg_sum_kernel(x_ref, o_ref, acc_ref, *, block_rows, blocks_per_core,
                    valid_rows, need_mask):
    c = pl.program_id(0)   # core-split axis ("parallel"); size 1 on v5e/v6e
    i = pl.program_id(1)   # streaming/reduction axis ("arbitrary")

    @pl.when(i == 0)
    def _():
        acc_ref[...] = jnp.zeros_like(acc_ref)

    row_groups = block_rows // SUBLANES

    def accumulate(x):
        # Layout-preserving split of the sublane-major axis; folds the whole
        # tile into the tiny (8, 128) accumulator.
        acc_ref[...] += x.reshape(row_groups, SUBLANES, LANES).sum(axis=0)

    if need_mask:
        start = (c * blocks_per_core + i) * block_rows
        is_partial = start + block_rows > valid_rows

        @pl.when(jnp.logical_not(is_partial))
        def _():
            # Fast path: fully-valid tile, no iota/compare/select.
            accumulate(x_ref[...].astype(jnp.float32))

        @pl.when(is_partial)
        def _():
            # Only the ragged last tile pays for masking (zeros the rows past
            # the end of the slab, whose contents are unspecified).
            x = x_ref[...].astype(jnp.float32)
            row = start + jax.lax.broadcasted_iota(jnp.int32, x.shape, 0)
            accumulate(jnp.where(row < valid_rows, x, 0.0))
    else:
        accumulate(x_ref[...].astype(jnp.float32))

    @pl.when(i == pl.num_programs(1) - 1)
    def _():
        # One small cross-lane reduce per core slot; raw partial sum.
        o_ref[0, 0] = jnp.sum(acc_ref[...])


def generator_loss(neg):
    """Equivalent of GeneratorLoss().forward(neg): scalar -mean(neg)."""
    total_n = neg.size
    flat = neg.reshape(-1)          # keep native dtype; cast happens in-kernel

    # Lane-dense (rows, 128) slab; pad only the tail (< 1024 zeros).  Padded
    # zeros do not bias the sum since we divide by the true total_n.
    min_chunk = SUBLANES * LANES
    padded_n = -(-total_n // min_chunk) * min_chunk
    if padded_n != total_n:
        flat = jnp.pad(flat, (0, padded_n - total_n))
    rows = padded_n // LANES
    slab = flat.reshape(rows, LANES)

    # Byte-budgeted tile size (narrow dtypes get more rows per tile), capped so
    # the per-tile f32 working copy stays bounded; always a multiple of 8.
    itemsize = int(jnp.dtype(neg.dtype).itemsize)
    budget_rows = min(TARGET_TILE_BYTES // (LANES * itemsize),
                      MAX_F32_WORK_BYTES // (LANES * 4))
    budget_rows = max(SUBLANES, (budget_rows // SUBLANES) * SUBLANES)
    block_rows = min(budget_rows, rows)

    n_blocks = -(-rows // block_rows)
    # Split across TensorCores only on 2-TC chips and only when the split is
    # phantom-block free (each core gets an integer number of real blocks).
    n_cores = 2 if (_num_tensorcores() == 2 and n_blocks >= 2
                    and n_blocks % 2 == 0) else 1
    blocks_per_core = n_blocks // n_cores
    need_mask = (rows % block_rows) != 0   # only the ragged last tile

    kernel = functools.partial(
        _neg_sum_kernel,
        block_rows=block_rows,
        blocks_per_core=blocks_per_core,
        valid_rows=rows,
        need_mask=need_mask,
    )

    partials = pl.pallas_call(
        kernel,
        out_shape=jax.ShapeDtypeStruct((n_cores, 1), jnp.float32),
        grid_spec=pltpu.PrefetchScalarGridSpec(
            num_scalar_prefetch=0,
            grid=(n_cores, blocks_per_core),
            in_specs=[pl.BlockSpec((block_rows, LANES),
                                   lambda c, i: (c * blocks_per_core + i, 0))],
            out_specs=pl.BlockSpec((1, 1), lambda c, i: (c, 0),
                                   memory_space=pltpu.SMEM),
            scratch_shapes=[pltpu.VMEM((SUBLANES, LANES), jnp.float32)],
        ),
        compiler_params=pltpu.CompilerParams(
            dimension_semantics=("parallel", "arbitrary"),
            vmem_limit_bytes=VMEM_LIMIT_BYTES),
        cost_estimate=pl.CostEstimate(
            flops=int(total_n), transcendentals=0,
            bytes_accessed=int(rows * LANES * itemsize) + 4 * n_cores),
    )(slab)

    loss = -jnp.sum(partials) / jnp.float32(total_n)
    return loss.astype(neg.dtype)


if __name__ == "__main__":
    key = jax.random.PRNGKey(0)
    # neg: discriminator scores on generated samples, e.g. (B, C, H, W)
    neg = jax.random.normal(key, (2, 4, 16, 16), dtype=jnp.float32)

    loss = generator_loss(neg)
    jax.block_until_ready(loss)

    ref = -jnp.mean(neg)
    assert jnp.allclose(loss, ref, atol=1e-6, rtol=1e-6), (loss, ref)
    print("KERNEL_OK")
</pallas_src>

<mosaic_0001>
module attributes {stable_mosaic.version = 11 : i64} {
  func.func @_neg_sum_kernel(%arg0: i32, %arg1: i32, %arg2: memref<16x128xf32, #tpu.memory_space<vmem>>, %arg3: memref<1x1xf32, #tpu.memory_space<smem>>, %arg4: memref<8x128xf32, #tpu.memory_space<vmem>>) attributes {dimension_semantics = [#tpu.dimension_semantics<parallel>, #tpu.dimension_semantics<arbitrary>], iteration_bounds = array<i64: 1, 1>, scalar_prefetch = 0 : i64, scratch_operands = 1 : i64, tpu.core_type = #tpu.core_type<tc>, window_params = [{transform_indices = @transform_0, window_bounds = array<i64: 16, 128>}, {transform_indices = @transform_1, window_bounds = array<i64: 1, 1>}]} {
    %c0_i32 = arith.constant 0 : i32
    %0 = arith.cmpi eq, %arg1, %c0_i32 : i32
    %1 = arith.extui %0 : i1 to i32
    %c0_i32_0 = arith.constant 0 : i32
    %2 = arith.cmpi ne, %1, %c0_i32_0 : i32
    scf.if %2 {
      %cst_8 = arith.constant 0.000000e+00 : f32
      %12 = vector.broadcast %cst_8 : f32 to vector<8x128xf32>
      %c0_9 = arith.constant 0 : index
      %c0_10 = arith.constant 0 : index
      %13 = vector.load %arg4[%c0_9, %c0_10] : memref<8x128xf32, #tpu.memory_space<vmem>>, vector<8x128xf32>
      tpu.vector_store %arg4[%c0_9, %c0_10], %12 {strides = array<i32>} : memref<8x128xf32, #tpu.memory_space<vmem>>, vector<8x128xf32>,
    } else {
    }
    %c0 = arith.constant 0 : index
    %c0_1 = arith.constant 0 : index
    %3 = vector.load %arg2[%c0, %c0_1] : memref<16x128xf32, #tpu.memory_space<vmem>>, vector<16x128xf32>
    %c0_2 = arith.constant 0 : index
    %c0_3 = arith.constant 0 : index
    %4 = vector.load %arg4[%c0_2, %c0_3] : memref<8x128xf32, #tpu.memory_space<vmem>>, vector<8x128xf32>
    %5 = vector.shape_cast %3 : vector<16x128xf32> to vector<2x8x128xf32>
    %cst = arith.constant dense<0.000000e+00> : vector<8x128xf32>
    %6 = vector.multi_reduction <add>, %5, %cst [0] : vector<2x8x128xf32> to vector<8x128xf32>
    %7 = arith.addf %4, %6 : vector<8x128xf32>
    %c0_4 = arith.constant 0 : index
    %c0_5 = arith.constant 0 : index
    %8 = vector.load %arg4[%c0_4, %c0_5] : memref<8x128xf32, #tpu.memory_space<vmem>>, vector<8x128xf32>
    tpu.vector_store %arg4[%c0_4, %c0_5], %7 {strides = array<i32>} : memref<8x128xf32, #tpu.memory_space<vmem>>, vector<8x128xf32>,
    %c0_i32_6 = arith.constant 0 : i32
    %9 = arith.cmpi eq, %arg1, %c0_i32_6 : i32
    %10 = arith.extui %9 : i1 to i32
    %c0_i32_7 = arith.constant 0 : i32
    %11 = arith.cmpi ne, %10, %c0_i32_7 : i32
    scf.if %11 {
      %c0_8 = arith.constant 0 : index
      %c0_9 = arith.constant 0 : index
      %12 = vector.load %arg4[%c0_8, %c0_9] : memref<8x128xf32, #tpu.memory_space<vmem>>, vector<8x128xf32>
      %13 = vector.shape_cast %12 : vector<8x128xf32> to vector<1x8x128xf32>
      %cst_10 = arith.constant dense<0.000000e+00> : vector<1xf32>
      %14 = vector.multi_reduction <add>, %13, %cst_10 [1, 2] : vector<1x8x128xf32> to vector<1xf32>
      %15 = vector.shape_cast %14 : vector<1xf32> to vector<1x1x1xf32>
      %16 = vector.extract %15[0, 0, 0] : f32 from vector<1x1x1xf32>
      %c0_11 = arith.constant 0 : index
      %c0_12 = arith.constant 0 : index
      %17 = memref.load %arg3[%c0_11, %c0_12] : memref<1x1xf32, #tpu.memory_space<smem>>
      memref.store %16, %arg3[%c0_11, %c0_12] : memref<1x1xf32, #tpu.memory_space<smem>>
    } else {
    }
    return
  }
  func.func @transform_0(%arg0: i32, %arg1: i32) -> (i32, i32) {
    %c1_i32 = arith.constant 1 : i32
    %0 = arith.muli %arg0, %c1_i32 : i32
    %1 = arith.addi %0, %arg1 : i32
    %c0_i32 = arith.constant 0 : i32
    %c0_i32_0 = arith.constant 0 : i32
    return %1, %c0_i32 : i32, i32
  }
  func.func @transform_1(%arg0: i32, %arg1: i32) -> (i32, i32) {
    %c0_i32 = arith.constant 0 : i32
    %c0_i32_0 = arith.constant 0 : i32
    return %arg0, %c0_i32 : i32, i32
  }
}

</mosaic_0001>

<llo_original>
// kernel: tpu_custom_call.1
$region0: #{tpu_custom_call.1}
  #allocation0 [shape = 'u32[]', space=smem, size = 0x4, offset = 0x4, fixed_abs, tag = 'smem constant byte address 0x4 - core index']
  #allocation1 [shape = 'u32[72,128]{1,0:T(1,128)}', space=vmem, size = 0x9000, scoped, tag = 'internal scratch']
  #allocation2 [shape = 'f32[8,128]{1,0:T(8,128)}', space=vmem, size = 0x1000, scoped, tag = 'scratch operand']
  %s0 = inlined_call_operand.hbm [shape: f32[16,128], index: 0, kind: input, shape index: {}]
  %s1 = inlined_call_operand.hbm [shape: f32[1,1], index: 1, kind: output, shape index: {}]
  %s2 = sld [smem:[#allocation0]]
  $region26: #{tpu_custom_call.1} parent=0
    _
  %s4 = ssub.s32 1, %s2
  %s5 = scalar_select 0, %s4, %s2
  $region1: #{tpu_custom_call.1} parent=0
    #allocation3 [shape = 'u8[8192]{0}', space=vmem, size = 0x2000, scoped, tag = 'input window, operand 0, single buffered']
    #allocation4 [shape = 's32[1]{0}', space=sflag, size = 0x4, scoped, tag = 'scoped memory for tpu_custom_call.1']
    #allocation5 [shape = 's32[1]{0}', space=sflag, size = 0x4, scoped, tag = 'scoped memory for tpu_custom_call.1']
    #allocation6 [shape = 'u8[512]{0}', space=smem, size = 0x200, scoped, tag = 'output window, operand 0, single buffered']
    %6 = vsyncpa [#allocation4], 0
    %7 = vsyncpa [#allocation5], 0
    // Predicated region
    $region2: #{tpu_custom_call.1} parent=1 // pred_check
      _
    $region3: #{tpu_custom_call.1} parent=1 // pred_check_branch
      %9 = sbr.rel (0) target = $region5
    $region4: #{tpu_custom_call.1} parent=1 // pred_region
      %s10 = sadd.s32 0, 0
      %s11 = smul.u32 2, %s10
      %13 = vsyncadd [#allocation4], 0
      %s14 = smul.addr %s11, 8
      %s15 = scalar_lea.hbm %s0, %s14
      %s16 = sshll.u32 %s15, 4
      %s17 = int_to_ptr.hbm [resolvable:$true] %s16
      %s18 = sshll.u32 [#allocation3], 4
      %s19 = int_to_ptr.vmem [resolvable:$true] %s18
      %24 = dma.hbm_to_vmem [thread:$0]  %s17, 256, %s19, [#allocation4], 128, 128, 8
    $region5: #{tpu_custom_call.1} parent=1 // pred_fallthru
      _
    // Predicated region
    $region6: #{tpu_custom_call.1} parent=1 // pred_check
      _
    $region7: #{tpu_custom_call.1} parent=1 // pred_check_branch
      %26 = sbr.rel (0) target = $region9
    $region8: #{tpu_custom_call.1} parent=1 // pred_region
      %28 = dma.done [#allocation4], 256
    $region9: #{tpu_custom_call.1} parent=1 // pred_fallthru
      _
    %s29 = sadd.s32 0, 0
    %s30 = smul.u32 2, %s29
    %p31 = scmp.eq.s32.totalorder 0, 0
    // Predicated region
    $region10: #{tpu_custom_call.1} parent=1 // pred_check
      %p32 = pneg %p31
    $region11: #{tpu_custom_call.1} parent=1 // pred_check_branch
      %34 = sbr.rel (%p32) target = $region13
    $region12: #{tpu_custom_call.1} parent=1 // pred_region
      %35 = vst [vmem:[#allocation2] sm:$0xff] 0.0
    $region13: #{tpu_custom_call.1} parent=1 // pred_fallthru
      _
    %v36 = vld [vmem:[#allocation3] sm:$0xff]
    %v37 = vld [vmem:[#allocation3 + $0x8] sm:$0xff]
    %v38 = vld [vmem:[#allocation2] sm:$0xff]
    %v39 = vadd.f32 %v36, %v37
    %v40 = vadd.f32 %v38, %v39
    %41 = vst [vmem:[#allocation2] sm:$0xff] %v40
    // Predicated region
    $region14: #{tpu_custom_call.1} parent=1 // pred_check
      %p42 = pneg %p31
    $region15: #{tpu_custom_call.1} parent=1 // pred_check_branch
      %44 = sbr.rel (%p42) target = $region17
    $region16: #{tpu_custom_call.1} parent=1 // pred_region
      %v45 = vld [vmem:[#allocation2] sm:$0xff]
      %46 = vadd.xlane.f32.xlu0 %v45
      %v47 = vpop.xlane.xlu0 %46
      %v48 = vrot.slane %v47, 4
      %v49 = vadd.f32 %v47, %v48
      %v50 = vrot.slane %v49, 2
      %v51 = vadd.f32 %v49, %v50
      %v52 = vrot.slane %v51, 1
      %v53 = vadd.f32 %v51, %v52
      %s54 = vtos %v53
      %s55 = scalar_lea.smem [#allocation6], 0
      %56 = sst [smem:[%s55]] %s54
    $region17: #{tpu_custom_call.1} parent=1 // pred_fallthru
      _
    // Predicated region
    $region18: #{tpu_custom_call.1} parent=1 // pred_check
      _
    $region19: #{tpu_custom_call.1} parent=1 // pred_check_branch
      %58 = sbr.rel (0) target = $region21
    $region20: #{tpu_custom_call.1} parent=1 // pred_region
      %60 = vsyncadd [#allocation5], 0
      %s62 = sshll.u32 %s1, 4
      %s63 = int_to_ptr.hbm [resolvable:$true] %s62
      %65 = dma.smem_to_hbm [#allocation6], 16, %s63, [#allocation5]
    $region21: #{tpu_custom_call.1} parent=1 // pred_fallthru
      _
    // Predicated region
    $region22: #{tpu_custom_call.1} parent=1 // pred_check
      _
    $region23: #{tpu_custom_call.1} parent=1 // pred_check_branch
      %67 = sbr.rel (0) target = $region25
    $region24: #{tpu_custom_call.1} parent=1 // pred_region
      %69 = dma.done [#allocation5], 16
    $region25: #{tpu_custom_call.1} parent=1 // pred_fallthru
      _
    %70 = sfence
    %71 = vsyncpa [#allocation4], 1
    %72 = vsyncpa [#allocation5], 1

</llo_original>
